<compile_context>
chip_gen: v6e
topology: v6e:2x2x1
jax: 0.10.0
libtpu: 0.0.40
codegen_flags: <defaults>
</compile_context>

<pallas_src>
import functools

import jax
import jax.numpy as jnp
from jax.experimental import pallas as pl
from jax.experimental.pallas import tpu as pltpu


# ----------------------------------------------------------------------------
# Plain-JAX glue: sampling / grouping (data-dependent gathers, sequential FPS).
# ----------------------------------------------------------------------------
def square_distance(src, dst):
    # src: [B, N, C], dst: [B, M, C] -> [B, N, M]
    dist = -2.0 * jnp.einsum("bnc,bmc->bnm", src, dst)
    dist = dist + jnp.sum(src**2, -1)[:, :, None]
    dist = dist + jnp.sum(dst**2, -1)[:, None, :]
    return dist


def farthest_point_sample(xyz, npoint):
    # xyz: [B, N, 3] -> centroid indices [B, npoint]
    B, N, _ = xyz.shape

    def body(i, state):
        centroids, distance, farthest = state
        centroids = centroids.at[:, i].set(farthest)
        idx = jnp.broadcast_to(farthest[:, None, None], (B, 1, 3))
        centroid = jnp.take_along_axis(xyz, idx, axis=1)          # [B,1,3]
        dist = jnp.sum((xyz - centroid) ** 2, -1)
        distance = jnp.minimum(distance, dist)
        farthest = jnp.argmax(distance, -1).astype(jnp.int32)
        return centroids, distance, farthest

    centroids = jnp.zeros((B, npoint), dtype=jnp.int32)
    distance = jnp.full((B, N), 1e10, dtype=jnp.float32)
    # torch uses randint for the starting point; we use index 0 deterministically.
    farthest = jnp.zeros((B,), dtype=jnp.int32)
    centroids, _, _ = jax.lax.fori_loop(0, npoint, body, (centroids, distance, farthest))
    return centroids


def index_points(points, idx):
    # points: [B, N, C], idx: [B, S] or [B, S, K] -> [B, S, C] / [B, S, K, C]
    return jax.vmap(lambda p, i: p[i])(points, idx)


def query_ball_point(radius, nsample, xyz, new_xyz):
    # NOTE: if a query ball is empty, the sentinel N survives and JAX's gather
    # clamping picks the last point (PyTorch would index-error). Degenerate case.
    B, N, _ = xyz.shape
    S = new_xyz.shape[1]
    sqrdists = square_distance(new_xyz, xyz)                       # [B, S, N]
    group_idx = jnp.broadcast_to(jnp.arange(N, dtype=jnp.int32), (B, S, N))
    group_idx = jnp.where(sqrdists > radius**2, N, group_idx)
    # nsample smallest indices (ascending) via top_k on negated indices — cheaper
    # than a full sort over N.
    neg_top, _ = jax.lax.top_k(-group_idx, nsample)
    group_idx = -neg_top
    group_first = group_idx[:, :, :1]
    group_idx = jnp.where(group_idx == N, group_first, group_idx)
    return group_idx


# ----------------------------------------------------------------------------
# Pallas kernel: pointwise MLP (1x1 conv == matmul over channels, BN scale
# folded into weights) + shift + ReLU, then max over the K neighbours.
# ----------------------------------------------------------------------------
def _round_up(x, m):
    return ((x + m - 1) // m) * m


def _vmem_budget_and_tile_target():
    """Generation-aware VMEM limit + tile-size target (v7x: 64 MiB VMEM per TC)."""
    try:
        cap = int(getattr(pltpu.get_tpu_info(), "vmem_capacity_bytes", 64 << 20))
    except Exception:
        cap = 64 << 20                      # conservative fallback, safe everywhere
    if cap <= (64 << 20):                   # v7x-class
        return 48 << 20, 128
    return 100 << 20, 256                   # v5e / v6e: 128 MiB physical


def _choose_tile_s(S, B, target):
    """Largest multiple-of-8 divisor of S <= target, else S; try to keep >=2 grid
    steps so both v7x TensorCores get work."""
    if S <= target:
        ts = S
    else:
        ts = (target // 8) * 8
        while ts >= 8 and S % ts:
            ts -= 8
        if ts < 8:
            ts = S
    while B * (S // ts) < 2 and ts % 16 == 0 and S % (ts // 2) == 0:
        ts //= 2
    return ts


def _choose_chunk_s(ts, K, target_rows=1024):
    """Largest divisor of ts whose chunk (chunk_s*K rows) stays <= target_rows."""
    if ts * K <= target_rows:
        return ts
    for d in range(ts, 0, -1):
        if ts % d == 0 and d * K <= target_rows:
            return d
    return 1


def _sa_mlp_kernel(num_layers, K, chunk_s, *refs):
    # refs = (x, w0, sh0, w1, sh1, ..., out)
    #   x   : (1, TS*K, Cin) bf16 — centered xyz (+ point feats), pre-packed
    #   w_l : (Cin_l, Cout_pad_l) bf16, BN scale folded in
    #   sh_l: (1, Cout_pad_l) f32  — folded BN/bias shift
    #   out : (1, TS, Cout_pad_last) bf16
    x_ref = refs[0]
    layer_refs = [(refs[1 + 2 * l], refs[2 + 2 * l]) for l in range(num_layers)]
    o_ref = refs[-1]

    ts = o_ref.shape[1]
    c_out = o_ref.shape[-1]
    chunk_rows = chunk_s * K

    # Chunk the row dimension (TS*K) through the whole MLP so the live f32
    # intermediate stays small (important on v7x's 64 MiB VMEM per TC).
    for c in range(ts // chunk_s):
        y = x_ref[0, pl.ds(c * chunk_rows, chunk_rows), :]        # (chunk_rows, Cin) bf16
        for li, (w_ref, sh_ref) in enumerate(layer_refs):
            lhs = y if li == 0 else y.astype(jnp.bfloat16)
            y = jnp.dot(lhs, w_ref[...], preferred_element_type=jnp.float32)
            y = jnp.maximum(y + sh_ref[...], 0.0)                 # f32 epilogue
        # Max over the K neighbours of each centroid; lane-dense bf16 store.
        o_ref[0, pl.ds(c * chunk_s, chunk_s), :] = jnp.max(
            y.reshape(chunk_s, K, c_out), axis=1).astype(o_ref.dtype)


def sa_mlp_pallas(packed, weights, shifts, S, K):
    """packed: f32 [B, S*K, Cin] (already centered/concatenated);
    weights[l]: bf16 (Cin_l, Cout_pad_l) with BN scale folded in;
    shifts[l]: f32 (1, Cout_pad_l). Returns bf16 [B, S, Cout_pad_last]."""
    B = packed.shape[0]
    cin = packed.shape[-1]
    num_layers = len(weights)
    c_out_pad = weights[-1].shape[-1]

    vmem_limit, ts_target = _vmem_budget_and_tile_target()
    ts = _choose_tile_s(S, B, ts_target)
    chunk_s = _choose_chunk_s(ts, K)
    grid = (B, S // ts)

    args = [packed.astype(jnp.bfloat16)]                 # single packed bf16 slab
    in_specs = [pl.BlockSpec((1, ts * K, cin), lambda b, s: (b, s, 0))]
    for l in range(num_layers):
        for p in (weights[l], shifts[l]):
            args.append(p)
            # Grid-invariant operands: whole array resident in VMEM (no
            # per-step double buffering).
            in_specs.append(pl.BlockSpec(memory_space=pltpu.MemorySpace.VMEM))

    return pl.pallas_call(
        functools.partial(_sa_mlp_kernel, num_layers, K, chunk_s),
        out_shape=jax.ShapeDtypeStruct((B, S, c_out_pad), jnp.bfloat16),
        grid_spec=pltpu.PrefetchScalarGridSpec(
            num_scalar_prefetch=0,
            grid=grid,
            in_specs=in_specs,
            out_specs=pl.BlockSpec((1, ts, c_out_pad), lambda b, s: (b, s, 0)),
        ),
        compiler_params=pltpu.CompilerParams(
            dimension_semantics=("parallel", "parallel"),
            vmem_limit_bytes=vmem_limit,
        ),
    )(*args)


# ----------------------------------------------------------------------------
# SetAbstraction module (forward only), parameters built deterministically.
# BatchNorm is applied in eval mode (running stats); its scale is folded into
# the conv weight, its shift (incl. conv bias) into a per-channel add.
# ----------------------------------------------------------------------------
class SetAbstraction:
    def __init__(self, npoint, radius, nsample, in_channel, mlp, group_all=False, seed=0):
        self.npoint = npoint
        self.radius = radius
        self.nsample = nsample
        self.group_all = group_all

        first_layer = 3 + (in_channel if in_channel > 0 else 0)
        last_actual = first_layer
        last_pad = first_layer            # first-layer input channels are not padded

        key = jax.random.PRNGKey(seed)
        self.weights, self.shifts = [], []
        eps = 1e-5
        for out_channel in mlp:
            key, kw, kb, kg, kbeta, km, kv = jax.random.split(key, 7)
            # Conv2d(last, out, 1) weight [Cout, Cin, 1, 1] -> [Cin, Cout]
            w = 0.1 * jax.random.normal(kw, (last_actual, out_channel), jnp.float32)
            bias = 0.05 * jax.random.normal(kb, (out_channel,), jnp.float32)
            gamma = 1.0 + 0.1 * jax.random.normal(kg, (out_channel,), jnp.float32)
            beta = 0.05 * jax.random.normal(kbeta, (out_channel,), jnp.float32)
            running_mean = 0.05 * jax.random.normal(km, (out_channel,), jnp.float32)
            running_var = 1.0 + 0.1 * jax.random.uniform(kv, (out_channel,), jnp.float32)

            scale = gamma / jnp.sqrt(running_var + eps)
            shift = (bias - running_mean) * scale + beta
            w_fold = w * scale[None, :]                    # fold BN scale into weight

            out_pad = _round_up(out_channel, 128)          # lane-dense channel width
            w_full = jnp.zeros((last_pad, out_pad), jnp.float32)
            w_full = w_full.at[:last_actual, :out_channel].set(w_fold)
            sh_full = jnp.zeros((1, out_pad), jnp.float32)
            sh_full = sh_full.at[0, :out_channel].set(shift)

            self.weights.append(w_full.astype(jnp.bfloat16))   # bf16 MXU weights
            self.shifts.append(sh_full)                        # f32 epilogue shift
            last_actual = out_channel
            last_pad = out_pad
        self.out_channels = mlp[-1]

    def __call__(self, xyz, points=None):
        """xyz: [B, N, 3], points: [B, N, D] or None
        returns new_xyz [B, S, 3] (f32), new_points [B, S, C_out_last] (bf16)."""
        B, N, C = xyz.shape
        if self.group_all:
            new_xyz = jnp.zeros((B, 1, C), xyz.dtype)
            grouped = xyz.reshape(B, 1, N, C)              # no centering (matches torch)
            grouped_points = points.reshape(B, 1, N, -1) if points is not None else None
            S, K = 1, N
        else:
            fps_idx = farthest_point_sample(xyz, self.npoint)
            new_xyz = index_points(xyz, fps_idx)                           # [B, S, 3]
            idx = query_ball_point(self.radius, self.nsample, xyz, new_xyz)
            # Centroid subtraction in f32 BEFORE any bf16 cast; XLA fuses it
            # into the gather, so it costs no extra HBM traffic.
            grouped = index_points(xyz, idx) - new_xyz[:, :, None, :]      # [B, S, K, 3]
            grouped_points = index_points(points, idx) if points is not None else None
            S, K = self.npoint, self.nsample

        if grouped_points is not None:
            packed = jnp.concatenate([grouped, grouped_points], axis=-1)   # [B,S,K,3+D]
        else:
            packed = grouped
        cin = packed.shape[-1]
        packed = packed.reshape(B, S * K, cin)             # flat 2D slab for the kernel

        # TODO(synk): for wide inputs (3+D >= 64), gather inside the kernel instead
        # (scalar-prefetched idx + pl.ANY xyz/points + make_async_copy double-buffer)
        # to avoid materializing the grouped [B,S,K,3+D] tensor in HBM.
        out = sa_mlp_pallas(packed, self.weights, self.shifts, S, K)
        new_points = out[..., : self.out_channels]         # drop lane padding (bf16)
        return new_xyz, new_points


if __name__ == "__main__":
    key = jax.random.PRNGKey(0)
    k1, k2 = jax.random.split(key)
    B, N, D = 2, 64, 4
    xyz = jax.random.normal(k1, (B, N, 3), jnp.float32)
    points = jax.random.normal(k2, (B, N, D), jnp.float32)

    sa = SetAbstraction(npoint=16, radius=0.4, nsample=8, in_channel=D, mlp=[32, 64])
    new_xyz, new_points = sa(xyz, points)
    jax.block_until_ready((new_xyz, new_points))
    assert new_xyz.shape == (B, 16, 3)
    assert new_points.shape == (B, 16, 64)
    assert bool(jnp.all(jnp.isfinite(new_points.astype(jnp.float32))))
    print("KERNEL_OK")
</pallas_src>

<mosaic_0001>
module attributes {stable_mosaic.version = 11 : i64} {
  func.func @_sa_mlp_kernel(%arg0: i32, %arg1: i32, %arg2: memref<1x128x7xbf16, #tpu.memory_space<vmem>>, %arg3: memref<7x128xbf16, #tpu.memory_space<vmem>>, %arg4: memref<1x128xf32, #tpu.memory_space<vmem>>, %arg5: memref<128x128xbf16, #tpu.memory_space<vmem>>, %arg6: memref<1x128xf32, #tpu.memory_space<vmem>>, %arg7: memref<1x16x128xbf16, #tpu.memory_space<vmem>>) attributes {dimension_semantics = [#tpu.dimension_semantics<parallel>, #tpu.dimension_semantics<parallel>], iteration_bounds = array<i64: 2, 1>, scalar_prefetch = 0 : i64, scratch_operands = 0 : i64, tpu.core_type = #tpu.core_type<tc>, window_params = [{transform_indices = @transform_0, window_bounds = array<i64: 1, 128, 7>}, {pipeline_mode = #tpu.pipeline_mode<synchronous>, transform_indices = @transform_1, window_bounds = array<i64: 7, 128>}, {pipeline_mode = #tpu.pipeline_mode<synchronous>, transform_indices = @transform_2, window_bounds = array<i64: 1, 128>}, {pipeline_mode = #tpu.pipeline_mode<synchronous>, transform_indices = @transform_3, window_bounds = array<i64: 128, 128>}, {pipeline_mode = #tpu.pipeline_mode<synchronous>, transform_indices = @transform_4, window_bounds = array<i64: 1, 128>}, {transform_indices = @transform_5, window_bounds = array<i64: 1, 16, 128>}]} {
    %c0 = arith.constant 0 : index
    %c0_0 = arith.constant 0 : index
    %c0_1 = arith.constant 0 : index
    %0 = vector.load %arg2[%c0, %c0_0, %c0_1] : memref<1x128x7xbf16, #tpu.memory_space<vmem>>, vector<1x128x7xbf16>
    %1 = vector.shape_cast %0 : vector<1x128x7xbf16> to vector<128x7xbf16>
    %c0_2 = arith.constant 0 : index
    %c0_3 = arith.constant 0 : index
    %2 = vector.load %arg3[%c0_2, %c0_3] : memref<7x128xbf16, #tpu.memory_space<vmem>>, vector<7x128xbf16>
    %cst = arith.constant dense<0.000000e+00> : vector<128x128xf32>
    %3 = tpu.matmul %1, %2, %cst {dimension_numbers = #tpu.dot_dimension_numbers<[1], [0], [0], [1], [0, 0, 1, 1], [], []>} : vector<128x7xbf16>, vector<7x128xbf16>, vector<128x128xf32> -> vector<128x128xf32>
    %c0_4 = arith.constant 0 : index
    %c0_5 = arith.constant 0 : index
    %4 = vector.load %arg4[%c0_4, %c0_5] : memref<1x128xf32, #tpu.memory_space<vmem>>, vector<1x128xf32>
    %5 = vector.broadcast %4 : vector<1x128xf32> to vector<128x128xf32>
    %6 = arith.addf %3, %5 : vector<128x128xf32>
    %cst_6 = arith.constant 0.000000e+00 : f32
    %7 = vector.broadcast %cst_6 : f32 to vector<128x128xf32>
    %8 = arith.maximumf %6, %7 : vector<128x128xf32>
    %9 = arith.truncf %8 : vector<128x128xf32> to vector<128x128xbf16>
    %c0_7 = arith.constant 0 : index
    %c0_8 = arith.constant 0 : index
    %10 = vector.load %arg5[%c0_7, %c0_8] : memref<128x128xbf16, #tpu.memory_space<vmem>>, vector<128x128xbf16>
    %cst_9 = arith.constant dense<0.000000e+00> : vector<128x128xf32>
    %11 = tpu.matmul %9, %10, %cst_9 {dimension_numbers = #tpu.dot_dimension_numbers<[1], [0], [0], [1], [0, 0, 1, 1], [], []>} : vector<128x128xbf16>, vector<128x128xbf16>, vector<128x128xf32> -> vector<128x128xf32>
    %c0_10 = arith.constant 0 : index
    %c0_11 = arith.constant 0 : index
    %12 = vector.load %arg6[%c0_10, %c0_11] : memref<1x128xf32, #tpu.memory_space<vmem>>, vector<1x128xf32>
    %13 = vector.broadcast %12 : vector<1x128xf32> to vector<128x128xf32>
    %14 = arith.addf %11, %13 : vector<128x128xf32>
    %cst_12 = arith.constant 0.000000e+00 : f32
    %15 = vector.broadcast %cst_12 : f32 to vector<128x128xf32>
    %16 = arith.maximumf %14, %15 : vector<128x128xf32>
    %17 = vector.shape_cast %16 : vector<128x128xf32> to vector<16x8x128xf32>
    %cst_13 = arith.constant dense<0xFF800000> : vector<16x128xf32>
    %18 = vector.multi_reduction <maximumf>, %17, %cst_13 [1] : vector<16x8x128xf32> to vector<16x128xf32>
    %19 = arith.truncf %18 : vector<16x128xf32> to vector<16x128xbf16>
    %c0_14 = arith.constant 0 : index
    %c0_15 = arith.constant 0 : index
    %c0_16 = arith.constant 0 : index
    %20 = vector.load %arg7[%c0_14, %c0_15, %c0_16] : memref<1x16x128xbf16, #tpu.memory_space<vmem>>, vector<1x16x128xbf16>
    %21 = vector.shape_cast %20 : vector<1x16x128xbf16> to vector<16x128xbf16>
    %22 = vector.shape_cast %19 : vector<16x128xbf16> to vector<1x16x128xbf16>
    tpu.vector_store %arg7[%c0_14, %c0_15, %c0_16], %22 {strides = array<i32>} : memref<1x16x128xbf16, #tpu.memory_space<vmem>>, vector<1x16x128xbf16>,
    return
  }
  func.func @transform_0(%arg0: i32, %arg1: i32) -> (i32, i32, i32) {
    %c0_i32 = arith.constant 0 : i32
    %c0_i32_0 = arith.constant 0 : i32
    return %arg0, %arg1, %c0_i32 : i32, i32, i32
  }
  func.func @transform_1(%arg0: i32, %arg1: i32) -> (i32, i32) {
    %c0_i32 = arith.constant 0 : i32
    %c0_i32_0 = arith.constant 0 : i32
    %c0_i32_1 = arith.constant 0 : i32
    return %c0_i32, %c0_i32_0 : i32, i32
  }
  func.func @transform_2(%arg0: i32, %arg1: i32) -> (i32, i32) {
    %c0_i32 = arith.constant 0 : i32
    %c0_i32_0 = arith.constant 0 : i32
    %c0_i32_1 = arith.constant 0 : i32
    return %c0_i32, %c0_i32_0 : i32, i32
  }
  func.func @transform_3(%arg0: i32, %arg1: i32) -> (i32, i32) {
    %c0_i32 = arith.constant 0 : i32
    %c0_i32_0 = arith.constant 0 : i32
    %c0_i32_1 = arith.constant 0 : i32
    return %c0_i32, %c0_i32_0 : i32, i32
  }
  func.func @transform_4(%arg0: i32, %arg1: i32) -> (i32, i32) {
    %c0_i32 = arith.constant 0 : i32
    %c0_i32_0 = arith.constant 0 : i32
    %c0_i32_1 = arith.constant 0 : i32
    return %c0_i32, %c0_i32_0 : i32, i32
  }
  func.func @transform_5(%arg0: i32, %arg1: i32) -> (i32, i32, i32) {
    %c0_i32 = arith.constant 0 : i32
    %c0_i32_0 = arith.constant 0 : i32
    return %arg0, %arg1, %c0_i32 : i32, i32, i32
  }
}

</mosaic_0001>

<llo_original>
// kernel: tpu_custom_call.1
$region0: #{tpu_custom_call.1}
  #allocation0 [shape = 'u32[]', space=smem, size = 0x4, offset = 0x4, fixed_abs, tag = 'smem constant byte address 0x4 - core index']
  #allocation1 [shape = 'u32[144,128]{1,0:T(1,128)}', space=vmem, size = 0x12000, scoped, tag = 'internal scratch']
  %s0 = inlined_call_operand.vmem [shape: bf16[2,128,7], index: 0, kind: input, shape index: {}]
  %s1 = inlined_call_operand.vmem [shape: bf16[7,128], index: 1, kind: input, shape index: {}]
  %s2 = inlined_call_operand.vmem [shape: f32[1,128], index: 2, kind: input, shape index: {}]
  %s3 = inlined_call_operand.vmem [shape: bf16[128,128], index: 3, kind: input, shape index: {}]
  %s4 = inlined_call_operand.vmem [shape: f32[1,128], index: 4, kind: input, shape index: {}]
  %s5 = inlined_call_operand.hbm [shape: bf16[2,16,128], index: 5, kind: output, shape index: {}]
  %s6 = sld [smem:[#allocation0]]
  $region53: #{tpu_custom_call.1} parent=0
    _
  %s8 = ssub.s32 1, %s6
  %s9 = scalar_select 0, %s8, %s6
  $region1: #{tpu_custom_call.1} parent=0
    #allocation2 [shape = 'u8[8192]{0}', space=vmem, size = 0x2000, scoped, tag = 'output window, operand 0']
    #allocation3 [shape = 's32[2]{0}', space=sflag, size = 0x8, scoped, tag = 'scoped memory for tpu_custom_call.1']
    %10 = vsyncpa [#allocation3], 0
    %s11 = scalar_lea.sflag [#allocation3], 1
    %12 = vsyncpa %s11, 0
    loop: start=0, step=1, limit=4
    $region2: #{tpu_custom_call.1} parent=1 // loop_pre_header
      _
    $region3: #{tpu_custom_call.1} parent=1 // loop_header
      %s14 = sphi 0, %s18
      %p15 = scmp.ge.s32.totalorder %s14, 4
      %s21 = sphi 0, %s33
      %s22 = sphi 0, %s29
      %s23 = sphi 0, %s21
      %s24 = sphi 0, %s22
      %s25 = sphi 0, %s23
      %s26 = sphi 0, %s24
      %s38 = sphi 0, %s40
      %s41 = sphi 0, %s38
      %s42 = sphi 0, %s41
      %s58 = sphi 0, %s42
      %s62 = sphi 0, %s62
      %s64 = sphi 0, %s62
      %s65 = sphi 0, %s64
      %s79 = sphi 0, %s65
      %s83 = sphi 0, %s83
      %s85 = sphi 0, %s83
      %s86 = sphi 0, %s85
      %s100 = sphi 0, %s86
      %s104 = sphi 0, %s104
      %s106 = sphi 0, %s104
      %s107 = sphi 0, %s106
      %s121 = sphi 0, %s107
      %s125 = sphi 0, %s125
      %s127 = sphi 0, %s125
      %s128 = sphi 0, %s127
      %s142 = sphi 0, %s128
      %s150 = sphi 0, %s152
      %s153 = sphi 0, %s150
      %s154 = sphi 0, %s153
      %s170 = sphi 0, %s154
    $region4: #{tpu_custom_call.1} parent=1 // loop_header_branch
      %17 = sbr.rel (%p15) target = $region8
    $region5: #{tpu_custom_call.1} parent=1 // loop_body
      %s19 = ssub.s32 %s14, 1
      %s20 = ssub.s32 %s14, 2
      %s27 = sadd.s32 1, %s22
      %p28 = scmp.ge.s32.totalorder %s27, 1
      %s29 = scalar_select %p28, 0, %s27
      %s30 = sadd.s32 1, %s21
      %s31 = scalar_select %p28, %s30, %s21
      %p32 = scmp.ge.s32.totalorder %s31, 2
      %s33 = scalar_select %p32, 0, %s31
      %s34 = ssub.s32 %s21, %s33
      %s35 = ssub.s32 %s22, %s29
      %s36 = sor.u32 %s34, %s35
      %p37 = scmp.eq.s32.totalorder %s36, 0
      %s39 = sadd.s32 %s38, 1
      %s40 = scalar_select %p37, %s38, %s39
      %p43 = pneg %p37
      %p44 = scmp.eq.s32.totalorder %s14, 1
      %p45 = por %p43, %p44
      %p46 = scmp.ne.s32.totalorder %s38, %s41
      %p47 = scmp.eq.s32.totalorder %s14, 0
      %p48 = por %p46, %p47
      %p49 = scmp.ne.s32.totalorder %s38, %s41
      %p50 = scmp.eq.s32.totalorder %s19, 1
      %p51 = por %p49, %p50
      %p52 = scmp.ne.s32.totalorder %s41, %s42
      %p53 = scmp.eq.s32.totalorder %s19, 0
      %p54 = por %p52, %p53
      %p55 = scmp.ne.s32.totalorder %s41, %s42
      %p56 = scmp.eq.s32.totalorder %s20, 1
      %p57 = por %p55, %p56
      %p59 = scmp.ne.s32.totalorder %s42, %s58
      %p60 = scmp.eq.s32.totalorder %s20, 0
      %p61 = por %p59, %p60
      %s63 = sadd.s32 %s62, 1
      %p66 = scmp.eq.s32.totalorder %s14, 1
      %p67 = scmp.ne.s32.totalorder %s62, %s64
      %p68 = scmp.eq.s32.totalorder %s14, 0
      %p69 = por %p67, %p68
      %p70 = scmp.ne.s32.totalorder %s62, %s64
      %p71 = scmp.eq.s32.totalorder %s19, 1
      %p72 = por %p70, %p71
      %p73 = scmp.ne.s32.totalorder %s64, %s65
      %p74 = scmp.eq.s32.totalorder %s19, 0
      %p75 = por %p73, %p74
      %p76 = scmp.ne.s32.totalorder %s64, %s65
      %p77 = scmp.eq.s32.totalorder %s20, 1
      %p78 = por %p76, %p77
      %p80 = scmp.ne.s32.totalorder %s65, %s79
      %p81 = scmp.eq.s32.totalorder %s20, 0
      %p82 = por %p80, %p81
      %s84 = sadd.s32 %s83, 1
      %p87 = scmp.eq.s32.totalorder %s14, 1
      %p88 = scmp.ne.s32.totalorder %s83, %s85
      %p89 = scmp.eq.s32.totalorder %s14, 0
      %p90 = por %p88, %p89
      %p91 = scmp.ne.s32.totalorder %s83, %s85
      %p92 = scmp.eq.s32.totalorder %s19, 1
      %p93 = por %p91, %p92
      %p94 = scmp.ne.s32.totalorder %s85, %s86
      %p95 = scmp.eq.s32.totalorder %s19, 0
      %p96 = por %p94, %p95
      %p97 = scmp.ne.s32.totalorder %s85, %s86
      %p98 = scmp.eq.s32.totalorder %s20, 1
      %p99 = por %p97, %p98
      %p101 = scmp.ne.s32.totalorder %s86, %s100
      %p102 = scmp.eq.s32.totalorder %s20, 0
      %p103 = por %p101, %p102
      %s105 = sadd.s32 %s104, 1
      %p108 = scmp.eq.s32.totalorder %s14, 1
      %p109 = scmp.ne.s32.totalorder %s104, %s106
      %p110 = scmp.eq.s32.totalorder %s14, 0
      %p111 = por %p109, %p110
      %p112 = scmp.ne.s32.totalorder %s104, %s106
      %p113 = scmp.eq.s32.totalorder %s19, 1
      %p114 = por %p112, %p113
      %p115 = scmp.ne.s32.totalorder %s106, %s107
      %p116 = scmp.eq.s32.totalorder %s19, 0
      %p117 = por %p115, %p116
      %p118 = scmp.ne.s32.totalorder %s106, %s107
      %p119 = scmp.eq.s32.totalorder %s20, 1
      %p120 = por %p118, %p119
      %p122 = scmp.ne.s32.totalorder %s107, %s121
      %p123 = scmp.eq.s32.totalorder %s20, 0
      %p124 = por %p122, %p123
      %s126 = sadd.s32 %s125, 1
      %p129 = scmp.eq.s32.totalorder %s14, 1
      %p130 = scmp.ne.s32.totalorder %s125, %s127
      %p131 = scmp.eq.s32.totalorder %s14, 0
      %p132 = por %p130, %p131
      %p133 = scmp.ne.s32.totalorder %s125, %s127
      %p134 = scmp.eq.s32.totalorder %s19, 1
      %p135 = por %p133, %p134
      %p136 = scmp.ne.s32.totalorder %s127, %s128
      %p137 = scmp.eq.s32.totalorder %s19, 0
      %p138 = por %p136, %p137
      %p139 = scmp.ne.s32.totalorder %s127, %s128
      %p140 = scmp.eq.s32.totalorder %s20, 1
      %p141 = por %p139, %p140
      %p143 = scmp.ne.s32.totalorder %s128, %s142
      %p144 = scmp.eq.s32.totalorder %s20, 0
      %p145 = por %p143, %p144
      %s146 = ssub.s32 %s21, %s33
      %s147 = ssub.s32 %s22, %s29
      %s148 = sor.u32 %s146, %s147
      %p149 = scmp.eq.s32.totalorder %s148, 0
      %s151 = sadd.s32 %s150, 1
      %s152 = scalar_select %p149, %s150, %s151
      %p155 = pneg %p149
      %p156 = scmp.eq.s32.totalorder %s14, 1
      %p157 = por %p155, %p156
      %p158 = scmp.ne.s32.totalorder %s150, %s153
      %p159 = scmp.eq.s32.totalorder %s14, 0
      %p160 = por %p158, %p159
      %p161 = scmp.ne.s32.totalorder %s150, %s153
      %p162 = scmp.eq.s32.totalorder %s19, 1
      %p163 = por %p161, %p162
      %p164 = scmp.ne.s32.totalorder %s153, %s154
      %p165 = scmp.eq.s32.totalorder %s19, 0
      %p166 = por %p164, %p165
      %p167 = scmp.ne.s32.totalorder %s153, %s154
      %p168 = scmp.eq.s32.totalorder %s20, 1
      %p169 = por %p167, %p168
      %p171 = scmp.ne.s32.totalorder %s154, %s170
      %p172 = scmp.eq.s32.totalorder %s20, 0
      %p173 = por %p171, %p172
      %p174 = scmp.le.s32.totalorder 1, %s14
      %p175 = scmp.lt.s32.totalorder %s14, 3
      %p176 = pnand %p174, %p175
      %p177 = pneg %p176
      // Predicated region
      $region9: #{tpu_custom_call.1} parent=5 // pred_check
        _
      $region10: #{tpu_custom_call.1} parent=5 // pred_check_branch
        %179 = sbr.rel (%p176) target = $region12
      $region11: #{tpu_custom_call.1} parent=5 // pred_region
        %s180 = ssub.s32 %s14, 1
        // Predicated region
        $region13: #{tpu_custom_call.1} parent=11 // pred_check
          %p181 = pneg %p75
        $region14: #{tpu_custom_call.1} parent=11 // pred_check_branch
          %183 = sbr.rel (%p181) target = $region16
        $region15: #{tpu_custom_call.1} parent=11 // pred_region
          _
        $region16: #{tpu_custom_call.1} parent=11 // pred_fallthru
          _
        // Predicated region
        $region17: #{tpu_custom_call.1} parent=11 // pred_check
          %p184 = pneg %p96
        $region18: #{tpu_custom_call.1} parent=11 // pred_check_branch
          %186 = sbr.rel (%p184) target = $region20
        $region19: #{tpu_custom_call.1} parent=11 // pred_region
          _
        $region20: #{tpu_custom_call.1} parent=11 // pred_fallthru
          _
        // Predicated region
        $region21: #{tpu_custom_call.1} parent=11 // pred_check
          %p187 = pneg %p117
        $region22: #{tpu_custom_call.1} parent=11 // pred_check_branch
          %189 = sbr.rel (%p187) target = $region24
        $region23: #{tpu_custom_call.1} parent=11 // pred_region
          _
        $region24: #{tpu_custom_call.1} parent=11 // pred_fallthru
          _
        // Predicated region
        $region25: #{tpu_custom_call.1} parent=11 // pred_check
          %p190 = pneg %p138
        $region26: #{tpu_custom_call.1} parent=11 // pred_check_branch
          %192 = sbr.rel (%p190) target = $region28
        $region27: #{tpu_custom_call.1} parent=11 // pred_region
          _
        $region28: #{tpu_custom_call.1} parent=11 // pred_fallthru
          _
      $region12: #{tpu_custom_call.1} parent=5 // pred_fallthru
        _
      %p193 = scmp.lt.s32.totalorder %s14, 2
      // Predicated region
      $region29: #{tpu_custom_call.1} parent=5 // pred_check
        %p194 = pneg %p193
      $region30: #{tpu_custom_call.1} parent=5 // pred_check_branch
        %196 = sbr.rel (%p194) target = $region32
      $region31: #{tpu_custom_call.1} parent=5 // pred_region
        // Predicated region
        $region33: #{tpu_custom_call.1} parent=31 // pred_check
          %p197 = pneg %p48
        $region34: #{tpu_custom_call.1} parent=31 // pred_check_branch
          %199 = sbr.rel (%p197) target = $region36
        $region35: #{tpu_custom_call.1} parent=31 // pred_region
          %s200 = smul.u32 16, %s22
          %p201 = scmp.lt.s32.totalorder %s21, 1
          %s202 = scalar_select %p201, %s21, 1
          %p203 = scmp.lt.s32.totalorder %s200, 15
          %s204 = scalar_select %p203, %s200, 15
          %s205 = smul.addr %s202, 16
          %s206 = sadd.s32 %s204, %s205
          %s207 = smul.addr %s206, 4
          %s208 = scalar_lea.vmem %s0, %s207
          %s209 = smul.u32 16, %s22
        $region36: #{tpu_custom_call.1} parent=31 // pred_fallthru
          _
      $region32: #{tpu_custom_call.1} parent=5 // pred_fallthru
        _
      %p210 = scmp.le.s32.totalorder 1, %s14
      %p211 = scmp.lt.s32.totalorder %s14, 3
      %p212 = pnand %p210, %p211
      %p213 = pneg %p212
      // Predicated region
      $region37: #{tpu_custom_call.1} parent=5 // pred_check
        _
      $region38: #{tpu_custom_call.1} parent=5 // pred_check_branch
        %215 = sbr.rel (%p212) target = $region40
      $region39: #{tpu_custom_call.1} parent=5 // pred_region
        %s216 = ssub.s32 %s14, 1
        %s217 = smul.u32 16, %s24
        %p218 = scmp.lt.s32.totalorder %s23, 1
        %s219 = scalar_select %p218, %s23, 1
        %p220 = scmp.lt.s32.totalorder %s217, 15
        %s221 = scalar_select %p220, %s217, 15
        %s222 = smul.addr %s219, 16
        %s223 = sadd.s32 %s221, %s222
        %s224 = smul.addr %s223, 4
        %s225 = scalar_lea.vmem %s0, %s224
        %p226 = pneg %p54
        %p227 = pneg %p51
        %p228 = pneg %p75
        %p229 = pneg %p72
        %p230 = pneg %p96
        %p231 = pneg %p93
        %p232 = pneg %p117
        %p233 = pneg %p114
        %p234 = pneg %p138
        %p235 = pneg %p135
        %p236 = pneg %p166
        %p237 = pneg %p163
        %s238 = sand.u32 %s153, 1
        %s239 = scalar_lea.sflag [#allocation3], %s238
        %s240 = sand.u32 %s153, 1
        %s241 = smul.addr %s240, 8
        %s242 = scalar_lea.vmem [#allocation2], %s241
        %s243 = smul.u32 16, %s24
        %p244 = scmp.lt.s32.totalorder %s23, 1
        %s245 = scalar_select %p244, %s23, 1
        %p246 = scmp.lt.s32.totalorder %s243, 15
        %s247 = scalar_select %p246, %s243, 15
        %s248 = smul.addr %s245, 16
        %s249 = sadd.s32 %s247, %s248
        %s250 = smul.addr %s249, 4
        %s251 = scalar_lea.vmem %s0, %s250
        %s252 = smul.u32 16, %s24
        %s253 = smul.u32 2, %s24
        %v255 = vld [vmem:[%s251] sm:$0xf]
        %v256 = vld [vmem:[%s251 + $0x4] sm:$0xf]
        %v257 = vld [vmem:[%s251 + $0x8] sm:$0xf]
        %v258 = vld [vmem:[%s251 + $0xc] sm:$0xf]
        %v259 = vld [vmem:[%s251 + $0x10] sm:$0xf]
        %v260 = vld [vmem:[%s251 + $0x14] sm:$0xf]
        %v261 = vld [vmem:[%s251 + $0x18] sm:$0xf]
        %v262 = vld [vmem:[%s251 + $0x1c] sm:$0xf]
        %v263 = vld [vmem:[%s251 + $0x20] sm:$0xf]
        %v264 = vld [vmem:[%s251 + $0x24] sm:$0xf]
        %v265 = vld [vmem:[%s251 + $0x28] sm:$0xf]
        %v266 = vld [vmem:[%s251 + $0x2c] sm:$0xf]
        %v267 = vld [vmem:[%s251 + $0x30] sm:$0xf]
        %v268 = vld [vmem:[%s251 + $0x34] sm:$0xf]
        %v269 = vld [vmem:[%s251 + $0x38] sm:$0xf]
        %v270 = vld [vmem:[%s251 + $0x3c] sm:$0xf]
        %v271 = vld [vmem:[%s1] sm:$0xf]
        %v272 = vld [vmem:[%s2] sm:$0x1]
        %v274 = vlaneseq
        %v275 = vshrl.u32 %v274, 7
        %v276 = vsub.s32 0, %v275
        %v277 = vrot.slane %v272, %v276
        %v295 = vunpack.c.l.b16 %v255
        %v296 = vunpack.c.l.b16 %v256
        %v297 = vunpack.c.l.b16 %v257
        %v298 = vunpack.c.l.b16 %v258
        %v299 = vunpack.c.l.b16 %v259
        %v300 = vunpack.c.l.b16 %v260
        %v301 = vunpack.c.l.b16 %v261
        %v302 = vunpack.c.l.b16 %v262
        %v303 = vunpack.c.l.b16 %v263
        %v304 = vunpack.c.l.b16 %v264
        %v305 = vunpack.c.l.b16 %v265
        %v306 = vunpack.c.l.b16 %v266
        %v307 = vunpack.c.l.b16 %v267
        %v308 = vunpack.c.l.b16 %v268
        %v309 = vunpack.c.l.b16 %v269
        %v310 = vunpack.c.l.b16 %v270
        %v311 = vpack.c.b16 %v296, %v295
        %v312 = vpack.c.b16 %v298, %v297
        %v313 = vpack.c.b16 %v300, %v299
        %v314 = vpack.c.b16 %v302, %v301
        %v315 = vpack.c.b16 %v304, %v303
        %v316 = vpack.c.b16 %v306, %v305
        %v317 = vpack.c.b16 %v308, %v307
        %v318 = vpack.c.b16 %v310, %v309
        %vm319 = vcmask 56320
        %v321 = vsel %vm319, %v311, 0
        %v324 = vsel %vm319, %v312, 0
        %v327 = vsel %vm319, %v313, 0
        %v330 = vsel %vm319, %v314, 0
        %v333 = vsel %vm319, %v315, 0
        %v336 = vsel %vm319, %v316, 0
        %v339 = vsel %vm319, %v317, 0
        %v342 = vsel %vm319, %v318, 0
        %vm344 = vcmask 1042432
        %vm345 = vcmask 1043456
        %v346 = vsel %vm344, 4294967295, 65535
        %v347 = vsel %vm345, %v346, 0
        %v349 = vand.u32 %v271, %v347
        %351 = vmatprep.subr.bf16.mxu0 0
        %352 = vmatpush1.bf16.msra.mxu0 0
        %353 = vmatprep.subr.bf16.mxu0 0
        %354 = vmatpush1.bf16.msra.mxu0 0
        %355 = vmatprep.subr.bf16.mxu0 0
        %356 = vmatpush1.bf16.msra.mxu0 0
        %357 = vmatprep.subr.bf16.mxu0 0
        %358 = vmatpush1.bf16.msra.mxu0 0
        %359 = vmatprep.subr.bf16.mxu0 0
        %360 = vmatpush1.bf16.msra.mxu0 0
        %361 = vmatprep.subr.bf16.mxu0 0
        %362 = vmatpush1.bf16.msra.mxu0 0
        %363 = vmatprep.subr.bf16.mxu0 0
        %364 = vmatpush1.bf16.msra.mxu0 0
        %365 = vmatprep.subr.bf16.mxu0 0
        %366 = vmatpush1.bf16.msra.mxu0 %v349
        %367 = vmatprep.subr.bf16.mxu0 0
        %368 = vmatpush2.bf16.msra.mxu0 0
        %369 = vmatprep.subr.bf16.mxu0 0
        %370 = vmatpush2.bf16.msra.mxu0 0
        %371 = vmatprep.subr.bf16.mxu0 0
        %372 = vmatpush2.bf16.msra.mxu0 0
        %373 = vmatprep.subr.bf16.mxu0 0
        %374 = vmatpush2.bf16.msra.mxu0 0
        %375 = vmatprep.subr.bf16.mxu0 0
        %376 = vmatpush2.bf16.msra.mxu0 0
        %377 = vmatprep.subr.bf16.mxu0 0
        %378 = vmatpush2.bf16.msra.mxu0 0
        %379 = vmatprep.subr.bf16.mxu0 0
        %380 = vmatpush2.bf16.msra.mxu0 0
        %381 = vmatprep.subr.bf16.mxu0 0
        %382 = vmatpush2.bf16.msra.mxu0 0
        %383 = vmatprep.mubr.bf16.mxu0 0
        %384 = vmatmul.mubr.bf16.gmra.mxu0 %v321
        %v385 = vpop.f32.mrf.mxu0
        %v386 = vadd.f32 %v277, %v385
        %v387 = vpop.f32.mrf.mxu0
        %v388 = vpop.f32.mrf.mxu0
        %v389 = vadd.f32 %v277, %v388
        %v390 = vpop.f32.mrf.mxu0
        %391 = vmatprep.mubr.bf16.mxu0 0
        %392 = vmatmul.mubr.bf16.gmra.mxu0 %v324
        %v393 = vpop.f32.mrf.mxu0
        %v394 = vadd.f32 %v277, %v393
        %v395 = vpop.f32.mrf.mxu0
        %v396 = vpop.f32.mrf.mxu0
        %v397 = vadd.f32 %v277, %v396
        %v398 = vpop.f32.mrf.mxu0
        %399 = vmatprep.mubr.bf16.mxu0 0
        %400 = vmatmul.mubr.bf16.gmra.mxu0 %v327
        %v401 = vpop.f32.mrf.mxu0
        %v402 = vadd.f32 %v277, %v401
        %v403 = vpop.f32.mrf.mxu0
        %v404 = vpop.f32.mrf.mxu0
        %v405 = vadd.f32 %v277, %v404
        %v406 = vpop.f32.mrf.mxu0
        %407 = vmatprep.mubr.bf16.mxu0 0
        %408 = vmatmul.mubr.bf16.gmra.mxu0 %v330
        %v409 = vpop.f32.mrf.mxu0
        %v410 = vadd.f32 %v277, %v409
        %v411 = vpop.f32.mrf.mxu0
        %v412 = vpop.f32.mrf.mxu0
        %v413 = vadd.f32 %v277, %v412
        %v414 = vpop.f32.mrf.mxu0
        %415 = vmatprep.mubr.bf16.mxu0 0
        %416 = vmatmul.mubr.bf16.gmra.mxu0 %v333
        %v417 = vpop.f32.mrf.mxu0
        %v418 = vadd.f32 %v277, %v417
        %v419 = vpop.f32.mrf.mxu0
        %v420 = vpop.f32.mrf.mxu0
        %v421 = vadd.f32 %v277, %v420
        %v422 = vpop.f32.mrf.mxu0
        %423 = vmatprep.mubr.bf16.mxu0 0
        %424 = vmatmul.mubr.bf16.gmra.mxu0 %v336
        %v425 = vpop.f32.mrf.mxu0
        %v426 = vadd.f32 %v277, %v425
        %v427 = vpop.f32.mrf.mxu0
        %v428 = vpop.f32.mrf.mxu0
        %v429 = vadd.f32 %v277, %v428
        %v430 = vpop.f32.mrf.mxu0
        %431 = vmatprep.mubr.bf16.mxu0 0
        %432 = vmatmul.mubr.bf16.gmra.mxu0 %v339
        %v433 = vpop.f32.mrf.mxu0
        %v434 = vadd.f32 %v277, %v433
        %v435 = vpop.f32.mrf.mxu0
        %v436 = vpop.f32.mrf.mxu0
        %v437 = vadd.f32 %v277, %v436
        %v438 = vpop.f32.mrf.mxu0
        %439 = vmatprep.mubr.bf16.mxu0 0
        %440 = vmatmul.mubr.bf16.gmra.mxu0 %v342
        %v441 = vpop.f32.mrf.mxu0
        %v442 = vadd.f32 %v277, %v441
        %v443 = vpop.f32.mrf.mxu0
        %v444 = vpop.f32.mrf.mxu0
        %v445 = vadd.f32 %v277, %v444
        %v446 = vpop.f32.mrf.mxu0
        %447 = vdwg.mxu0
        %v448 = vmax.f32 %v386, 0.0
        %v449 = vmax.f32 %v389, 0.0
        %v450 = vmax.f32 %v394, 0.0
        %v451 = vmax.f32 %v397, 0.0
        %v452 = vmax.f32 %v402, 0.0
        %v453 = vmax.f32 %v405, 0.0
        %v454 = vmax.f32 %v410, 0.0
        %v455 = vmax.f32 %v413, 0.0
        %v456 = vmax.f32 %v418, 0.0
        %v457 = vmax.f32 %v421, 0.0
        %v458 = vmax.f32 %v426, 0.0
        %v459 = vmax.f32 %v429, 0.0
        %v460 = vmax.f32 %v434, 0.0
        %v461 = vmax.f32 %v437, 0.0
        %v462 = vmax.f32 %v442, 0.0
        %v463 = vmax.f32 %v445, 0.0
        %v464 = vpack.c.bf16 %v449, %v448
        %v465 = vpack.c.bf16 %v451, %v450
        %v466 = vpack.c.bf16 %v453, %v452
        %v467 = vpack.c.bf16 %v455, %v454
        %v468 = vpack.c.bf16 %v457, %v456
        %v469 = vpack.c.bf16 %v459, %v458
        %v470 = vpack.c.bf16 %v461, %v460
        %v471 = vpack.c.bf16 %v463, %v462
        %v472 = vld [vmem:[%s3] sm:$0xf]
        %v473 = vld [vmem:[%s3 + $0x4] sm:$0xf]
        %v474 = vld [vmem:[%s3 + $0x8] sm:$0xf]
        %v475 = vld [vmem:[%s3 + $0xc] sm:$0xf]
        %v476 = vld [vmem:[%s3 + $0x10] sm:$0xf]
        %v477 = vld [vmem:[%s3 + $0x14] sm:$0xf]
        %v478 = vld [vmem:[%s3 + $0x18] sm:$0xf]
        %v479 = vld [vmem:[%s3 + $0x1c] sm:$0xf]
        %v480 = vld [vmem:[%s3 + $0x20] sm:$0xf]
        %v481 = vld [vmem:[%s3 + $0x24] sm:$0xf]
        %v482 = vld [vmem:[%s3 + $0x28] sm:$0xf]
        %v483 = vld [vmem:[%s3 + $0x2c] sm:$0xf]
        %v484 = vld [vmem:[%s3 + $0x30] sm:$0xf]
        %v485 = vld [vmem:[%s3 + $0x34] sm:$0xf]
        %v486 = vld [vmem:[%s3 + $0x38] sm:$0xf]
        %v487 = vld [vmem:[%s3 + $0x3c] sm:$0xf]
        %v488 = vld [vmem:[%s4] sm:$0x1]
        %v490 = vlaneseq
        %v491 = vshrl.u32 %v490, 7
        %v492 = vsub.s32 0, %v491
        %v493 = vrot.slane %v488, %v492
        %v511 = vunpack.c.l.b16 %v472
        %v512 = vunpack.c.l.b16 %v473
        %v513 = vunpack.c.l.b16 %v474
        %v514 = vunpack.c.l.b16 %v475
        %v515 = vunpack.c.l.b16 %v476
        %v516 = vunpack.c.l.b16 %v477
        %v517 = vunpack.c.l.b16 %v478
        %v518 = vunpack.c.l.b16 %v479
        %v519 = vunpack.c.l.b16 %v480
        %v520 = vunpack.c.l.b16 %v481
        %v521 = vunpack.c.l.b16 %v482
        %v522 = vunpack.c.l.b16 %v483
        %v523 = vunpack.c.l.b16 %v484
        %v524 = vunpack.c.l.b16 %v485
        %v525 = vunpack.c.l.b16 %v486
        %v526 = vunpack.c.l.b16 %v487
        %v527 = vpack.c.b16 %v512, %v511
        %v528 = vpack.c.b16 %v514, %v513
        %v529 = vpack.c.b16 %v516, %v515
        %v530 = vpack.c.b16 %v518, %v517
        %v531 = vpack.c.b16 %v520, %v519
        %v532 = vpack.c.b16 %v522, %v521
        %v533 = vpack.c.b16 %v524, %v523
        %v534 = vpack.c.b16 %v526, %v525
        %543 = vmatprep.subr.bf16.mxu0 0
        %544 = vmatpush1.bf16.msra.mxu0 %v534
        %545 = vmatprep.subr.bf16.mxu0 0
        %546 = vmatpush1.bf16.msra.mxu0 %v533
        %547 = vmatprep.subr.bf16.mxu0 0
        %548 = vmatpush1.bf16.msra.mxu0 %v532
        %549 = vmatprep.subr.bf16.mxu0 0
        %550 = vmatpush1.bf16.msra.mxu0 %v531
        %551 = vmatprep.subr.bf16.mxu0 0
        %552 = vmatpush1.bf16.msra.mxu0 %v530
        %553 = vmatprep.subr.bf16.mxu0 0
        %554 = vmatpush1.bf16.msra.mxu0 %v529
        %555 = vmatprep.subr.bf16.mxu0 0
        %556 = vmatpush1.bf16.msra.mxu0 %v528
        %557 = vmatprep.subr.bf16.mxu0 0
        %558 = vmatpush1.bf16.msra.mxu0 %v527
        %559 = vmatprep.subr.bf16.mxu0 0
        %560 = vmatpush2.bf16.msra.mxu0 0
        %561 = vmatprep.subr.bf16.mxu0 0
        %562 = vmatpush2.bf16.msra.mxu0 0
        %563 = vmatprep.subr.bf16.mxu0 0
        %564 = vmatpush2.bf16.msra.mxu0 0
        %565 = vmatprep.subr.bf16.mxu0 0
        %566 = vmatpush2.bf16.msra.mxu0 0
        %567 = vmatprep.subr.bf16.mxu0 0
        %568 = vmatpush2.bf16.msra.mxu0 0
        %569 = vmatprep.subr.bf16.mxu0 0
        %570 = vmatpush2.bf16.msra.mxu0 0
        %571 = vmatprep.subr.bf16.mxu0 0
        %572 = vmatpush2.bf16.msra.mxu0 0
        %573 = vmatprep.subr.bf16.mxu0 0
        %574 = vmatpush2.bf16.msra.mxu0 0
        %575 = vmatprep.mubr.bf16.mxu0 0
        %576 = vmatmul.mubr.bf16.gmra.mxu0 %v464
        %v577 = vpop.f32.mrf.mxu0
        %v578 = vadd.f32 %v493, %v577
        %v579 = vpop.f32.mrf.mxu0
        %v580 = vpop.f32.mrf.mxu0
        %v581 = vadd.f32 %v493, %v580
        %v582 = vpop.f32.mrf.mxu0
        %583 = vmatprep.mubr.bf16.mxu0 0
        %584 = vmatmul.mubr.bf16.gmra.mxu0 %v465
        %v585 = vpop.f32.mrf.mxu0
        %v586 = vadd.f32 %v493, %v585
        %v587 = vpop.f32.mrf.mxu0
        %v588 = vpop.f32.mrf.mxu0
        %v589 = vadd.f32 %v493, %v588
        %v590 = vpop.f32.mrf.mxu0
        %591 = vmatprep.mubr.bf16.mxu0 0
        %592 = vmatmul.mubr.bf16.gmra.mxu0 %v466
        %v593 = vpop.f32.mrf.mxu0
        %v594 = vadd.f32 %v493, %v593
        %v595 = vpop.f32.mrf.mxu0
        %v596 = vpop.f32.mrf.mxu0
        %v597 = vadd.f32 %v493, %v596
        %v598 = vpop.f32.mrf.mxu0
        %599 = vmatprep.mubr.bf16.mxu0 0
        %600 = vmatmul.mubr.bf16.gmra.mxu0 %v467
        %v601 = vpop.f32.mrf.mxu0
        %v602 = vadd.f32 %v493, %v601
        %v603 = vpop.f32.mrf.mxu0
        %v604 = vpop.f32.mrf.mxu0
        %v605 = vadd.f32 %v493, %v604
        %v606 = vpop.f32.mrf.mxu0
        %607 = vmatprep.mubr.bf16.mxu0 0
        %608 = vmatmul.mubr.bf16.gmra.mxu0 %v468
        %v609 = vpop.f32.mrf.mxu0
        %v610 = vadd.f32 %v493, %v609
        %v611 = vpop.f32.mrf.mxu0
        %v612 = vpop.f32.mrf.mxu0
        %v613 = vadd.f32 %v493, %v612
        %v614 = vpop.f32.mrf.mxu0
        %615 = vmatprep.mubr.bf16.mxu0 0
        %616 = vmatmul.mubr.bf16.gmra.mxu0 %v469
        %v617 = vpop.f32.mrf.mxu0
        %v618 = vadd.f32 %v493, %v617
        %v619 = vpop.f32.mrf.mxu0
        %v620 = vpop.f32.mrf.mxu0
        %v621 = vadd.f32 %v493, %v620
        %v622 = vpop.f32.mrf.mxu0
        %623 = vmatprep.mubr.bf16.mxu0 0
        %624 = vmatmul.mubr.bf16.gmra.mxu0 %v470
        %v625 = vpop.f32.mrf.mxu0
        %v626 = vadd.f32 %v493, %v625
        %v627 = vpop.f32.mrf.mxu0
        %v628 = vpop.f32.mrf.mxu0
        %v629 = vadd.f32 %v493, %v628
        %v630 = vpop.f32.mrf.mxu0
        %631 = vmatprep.mubr.bf16.mxu0 0
        %632 = vmatmul.mubr.bf16.gmra.mxu0 %v471
        %v633 = vpop.f32.mrf.mxu0
        %v634 = vadd.f32 %v493, %v633
        %v635 = vpop.f32.mrf.mxu0
        %v636 = vpop.f32.mrf.mxu0
        %v637 = vadd.f32 %v493, %v636
        %v638 = vpop.f32.mrf.mxu0
        %639 = vdwg.mxu0
        %v640 = vmax.f32 %v578, 0.0
        %v641 = vmax.f32 %v581, 0.0
        %v642 = vmax.f32 %v586, 0.0
        %v643 = vmax.f32 %v589, 0.0
        %v644 = vmax.f32 %v594, 0.0
        %v645 = vmax.f32 %v597, 0.0
        %v646 = vmax.f32 %v602, 0.0
        %v647 = vmax.f32 %v605, 0.0
        %v648 = vmax.f32 %v610, 0.0
        %v649 = vmax.f32 %v613, 0.0
        %v650 = vmax.f32 %v618, 0.0
        %v651 = vmax.f32 %v621, 0.0
        %v652 = vmax.f32 %v626, 0.0
        %v653 = vmax.f32 %v629, 0.0
        %v654 = vmax.f32 %v634, 0.0
        %v655 = vmax.f32 %v637, 0.0
        %v656 = vrot.slane %v640, 4
        %v657 = vmax.f32 %v640, %v656
        %v658 = vrot.slane %v657, 2
        %v659 = vmax.f32 %v657, %v658
        %v660 = vrot.slane %v659, 1
        %v661 = vmax.f32 %v659, %v660
        %v662 = vrot.slane %v641, 4
        %v663 = vmax.f32 %v641, %v662
        %v664 = vrot.slane %v663, 2
        %v665 = vmax.f32 %v663, %v664
        %v666 = vrot.slane %v665, 1
        %v667 = vmax.f32 %v665, %v666
        %v668 = vrot.slane %v642, 4
        %v669 = vmax.f32 %v642, %v668
        %v670 = vrot.slane %v669, 2
        %v671 = vmax.f32 %v669, %v670
        %v672 = vrot.slane %v671, 1
        %v673 = vmax.f32 %v671, %v672
        %v674 = vrot.slane %v643, 4
        %v675 = vmax.f32 %v643, %v674
        %v676 = vrot.slane %v675, 2
        %v677 = vmax.f32 %v675, %v676
        %v678 = vrot.slane %v677, 1
        %v679 = vmax.f32 %v677, %v678
        %v680 = vrot.slane %v644, 4
        %v681 = vmax.f32 %v644, %v680
        %v682 = vrot.slane %v681, 2
        %v683 = vmax.f32 %v681, %v682
        %v684 = vrot.slane %v683, 1
        %v685 = vmax.f32 %v683, %v684
        %v686 = vrot.slane %v645, 4
        %v687 = vmax.f32 %v645, %v686
        %v688 = vrot.slane %v687, 2
        %v689 = vmax.f32 %v687, %v688
        %v690 = vrot.slane %v689, 1
        %v691 = vmax.f32 %v689, %v690
        %v692 = vrot.slane %v646, 4
        %v693 = vmax.f32 %v646, %v692
        %v694 = vrot.slane %v693, 2
        %v695 = vmax.f32 %v693, %v694
        %v696 = vrot.slane %v695, 1
        %v697 = vmax.f32 %v695, %v696
        %v698 = vrot.slane %v647, 4
        %v699 = vmax.f32 %v647, %v698
        %v700 = vrot.slane %v699, 2
        %v701 = vmax.f32 %v699, %v700
        %v702 = vrot.slane %v701, 1
        %v703 = vmax.f32 %v701, %v702
        %v704 = vrot.slane %v648, 4
        %v705 = vmax.f32 %v648, %v704
        %v706 = vrot.slane %v705, 2
        %v707 = vmax.f32 %v705, %v706
        %v708 = vrot.slane %v707, 1
        %v709 = vmax.f32 %v707, %v708
        %v710 = vrot.slane %v649, 4
        %v711 = vmax.f32 %v649, %v710
        %v712 = vrot.slane %v711, 2
        %v713 = vmax.f32 %v711, %v712
        %v714 = vrot.slane %v713, 1
        %v715 = vmax.f32 %v713, %v714
        %v716 = vrot.slane %v650, 4
        %v717 = vmax.f32 %v650, %v716
        %v718 = vrot.slane %v717, 2
        %v719 = vmax.f32 %v717, %v718
        %v720 = vrot.slane %v719, 1
        %v721 = vmax.f32 %v719, %v720
        %v722 = vrot.slane %v651, 4
        %v723 = vmax.f32 %v651, %v722
        %v724 = vrot.slane %v723, 2
        %v725 = vmax.f32 %v723, %v724
        %v726 = vrot.slane %v725, 1
        %v727 = vmax.f32 %v725, %v726
        %v728 = vrot.slane %v652, 4
        %v729 = vmax.f32 %v652, %v728
        %v730 = vrot.slane %v729, 2
        %v731 = vmax.f32 %v729, %v730
        %v732 = vrot.slane %v731, 1
        %v733 = vmax.f32 %v731, %v732
        %v734 = vrot.slane %v653, 4
        %v735 = vmax.f32 %v653, %v734
        %v736 = vrot.slane %v735, 2
        %v737 = vmax.f32 %v735, %v736
        %v738 = vrot.slane %v737, 1
        %v739 = vmax.f32 %v737, %v738
        %v740 = vrot.slane %v654, 4
        %v741 = vmax.f32 %v654, %v740
        %v742 = vrot.slane %v741, 2
        %v743 = vmax.f32 %v741, %v742
        %v744 = vrot.slane %v743, 1
        %v745 = vmax.f32 %v743, %v744
        %v746 = vrot.slane %v655, 4
        %v747 = vmax.f32 %v655, %v746
        %v748 = vrot.slane %v747, 2
        %v749 = vmax.f32 %v747, %v748
        %v750 = vrot.slane %v749, 1
        %v751 = vmax.f32 %v749, %v750
        %v752 = vpack.c.bf16 %v661, %v661
        %v753 = vpack.c.bf16 %v667, %v667
        %v754 = vpack.c.bf16 %v673, %v673
        %v755 = vpack.c.bf16 %v679, %v679
        %v756 = vpack.c.bf16 %v685, %v685
        %v757 = vpack.c.bf16 %v691, %v691
        %v758 = vpack.c.bf16 %v697, %v697
        %v759 = vpack.c.bf16 %v703, %v703
        %v760 = vpack.c.bf16 %v709, %v709
        %v761 = vpack.c.bf16 %v715, %v715
        %v762 = vpack.c.bf16 %v721, %v721
        %v763 = vpack.c.bf16 %v727, %v727
        %v764 = vpack.c.bf16 %v733, %v733
        %v765 = vpack.c.bf16 %v739, %v739
        %v766 = vpack.c.bf16 %v745, %v745
        %v767 = vpack.c.bf16 %v751, %v751
        %v784 = vunpack.c.l.b16 %v752
        %v785 = vunpack.c.l.b16 %v753
        %v786 = vunpack.c.l.b16 %v754
        %v787 = vunpack.c.l.b16 %v755
        %v788 = vunpack.c.l.b16 %v756
        %v789 = vunpack.c.l.b16 %v757
        %v790 = vunpack.c.l.b16 %v758
        %v791 = vunpack.c.l.b16 %v759
        %v792 = vunpack.c.l.b16 %v760
        %v793 = vunpack.c.l.b16 %v761
        %v794 = vunpack.c.l.b16 %v762
        %v795 = vunpack.c.l.b16 %v763
        %v796 = vunpack.c.l.b16 %v764
        %v797 = vunpack.c.l.b16 %v765
        %v798 = vunpack.c.l.b16 %v766
        %v799 = vunpack.c.l.b16 %v767
        %v800 = vpack.c.b16 %v784, %v784
        %v801 = vpack.c.b16 %v785, %v785
        %v802 = vpack.c.b16 %v786, %v786
        %v803 = vpack.c.b16 %v787, %v787
        %v804 = vpack.c.b16 %v788, %v788
        %v805 = vpack.c.b16 %v789, %v789
        %v806 = vpack.c.b16 %v790, %v790
        %v807 = vpack.c.b16 %v791, %v791
        %v808 = vpack.c.b16 %v792, %v792
        %v809 = vpack.c.b16 %v793, %v793
        %v810 = vpack.c.b16 %v794, %v794
        %v811 = vpack.c.b16 %v795, %v795
        %v812 = vpack.c.b16 %v796, %v796
        %v813 = vpack.c.b16 %v797, %v797
        %v814 = vpack.c.b16 %v798, %v798
        %v815 = vpack.c.b16 %v799, %v799
        %v816 = vunpack.c.l.b16 %v800
        %v817 = vunpack.c.l.b16 %v801
        %v818 = vunpack.c.l.b16 %v802
        %v819 = vunpack.c.l.b16 %v803
        %v820 = vunpack.c.l.b16 %v804
        %v821 = vunpack.c.l.b16 %v805
        %v822 = vunpack.c.l.b16 %v806
        %v823 = vunpack.c.l.b16 %v807
        %v824 = vunpack.c.l.b16 %v808
        %v825 = vunpack.c.l.b16 %v809
        %v826 = vunpack.c.l.b16 %v810
        %v827 = vunpack.c.l.b16 %v811
        %v828 = vunpack.c.l.b16 %v812
        %v829 = vunpack.c.l.b16 %v813
        %v830 = vunpack.c.l.b16 %v814
        %v831 = vunpack.c.l.b16 %v815
        %vm832 = vcmask 1041409
        %v833 = vsel %vm832, %v817, %v816
        %vm834 = vcmask 1042434
        %v835 = vsel %vm834, %v818, %v833
        %vm836 = vcmask 1043459
        %v837 = vsel %vm836, %v819, %v835
        %vm838 = vcmask 1044484
        %v839 = vsel %vm838, %v820, %v837
        %vm840 = vcmask 1045509
        %v841 = vsel %vm840, %v821, %v839
        %vm842 = vcmask 1046534
        %v843 = vsel %vm842, %v822, %v841
        %vm844 = vcmask 1047559
        %v845 = vsel %vm844, %v823, %v843
        %v846 = vsel %vm832, %v825, %v824
        %v847 = vsel %vm834, %v826, %v846
        %v848 = vsel %vm836, %v827, %v847
        %v849 = vsel %vm838, %v828, %v848
        %v850 = vsel %vm840, %v829, %v849
        %v851 = vsel %vm842, %v830, %v850
        %v852 = vsel %vm844, %v831, %v851
        %v853 = vpack.c.b16 %v845, %v845
        %v854 = vpack.c.b16 %v852, %v852
        %857 = vst [vmem:[%s242] sm:$0xf] %v853
        %858 = vst [vmem:[%s242 + $0x4] sm:$0xf] %v854
        %s859 = sand.u32 %s153, 1
        %s860 = scalar_lea.sflag [#allocation3], %s859
        %s861 = sand.u32 %s153, 1
        %s862 = smul.addr %s861, 8
        %s863 = scalar_lea.vmem [#allocation2], %s862
        // Predicated region
        $region41: #{tpu_custom_call.1} parent=39 // pred_check
          %p864 = pneg %p163
        $region42: #{tpu_custom_call.1} parent=39 // pred_check_branch
          %866 = sbr.rel (%p864) target = $region44
        $region43: #{tpu_custom_call.1} parent=39 // pred_region
          %s867 = smul.u32 2, %s24
          %s869 = ssub.s32 128, 128
          %870 = vsyncadd %s860, %s869
          %s871 = smul.addr %s23, 2
          %s872 = sadd.s32 %s867, %s871
          %s873 = smul.addr %s872, 64
          %s874 = scalar_lea.hbm %s5, %s873
          %s875 = sshll.u32 %s863, 4
          %s876 = int_to_ptr.vmem [resolvable:$true] %s875
          %881 = dma.vmem_to_hbm [thread:$0]  %s876, 128, %s874, %s860, 64, 64, 4
        $region44: #{tpu_custom_call.1} parent=39 // pred_fallthru
          _
      $region40: #{tpu_custom_call.1} parent=5 // pred_fallthru
        _
      %p882 = scmp.le.s32.totalorder 2, %s14
      // Predicated region
      $region45: #{tpu_custom_call.1} parent=5 // pred_check
        %p883 = pneg %p882
      $region46: #{tpu_custom_call.1} parent=5 // pred_check_branch
        %885 = sbr.rel (%p883) target = $region48
      $region47: #{tpu_custom_call.1} parent=5 // pred_region
        %s886 = ssub.s32 %s14, 2
        // Predicated region
        $region49: #{tpu_custom_call.1} parent=47 // pred_check
          %p887 = pneg %p169
        $region50: #{tpu_custom_call.1} parent=47 // pred_check_branch
          %889 = sbr.rel (%p887) target = $region52
        $region51: #{tpu_custom_call.1} parent=47 // pred_region
          %s890 = sand.u32 %s154, 1
          %s891 = scalar_lea.sflag [#allocation3], %s890
          %s892 = sand.u32 %s154, 1
          %s893 = smul.addr %s892, 8
          %s894 = scalar_lea.vmem [#allocation2], %s893
          %895 = dma.done %s891, 128
        $region52: #{tpu_custom_call.1} parent=47 // pred_fallthru
          _
      $region48: #{tpu_custom_call.1} parent=5 // pred_fallthru
        _
    $region6: #{tpu_custom_call.1} parent=1 // loop_footer
      %s18 = sadd.s32 1, %s14
    $region7: #{tpu_custom_call.1} parent=1 // loop_footer_branch
      %13 = sbr.rel target = $region3
    $region8: #{tpu_custom_call.1} parent=1 // loop_exit
      _
    %896 = vsyncpa [#allocation3], 1
    %s897 = scalar_lea.sflag [#allocation3], 1
    %898 = vsyncpa %s897, 1

</llo_original>
